<compile_context>
chip_gen: v6e
topology: v6e:2x2x1
jax: 0.10.0
libtpu: 0.0.40
codegen_flags: <defaults>
</compile_context>

<pallas_src>
import functools

import jax
import jax.numpy as jnp
from jax.experimental import pallas as pl
from jax.experimental.pallas import tpu as pltpu

LANE = 128  # channel padding target (lane width)


# ----------------------------------------------------------------------------
# Fused Pallas kernel: pooling -> 4x GraphConv -> unpooling, all in VMEM
# ----------------------------------------------------------------------------
def _block_kernel(x_ref, p_ref, a_ref, u_ref,
                  w1_ref, b1_ref, w2_ref, b2_ref,
                  w3_ref, b3_ref, w4_ref, b4_ref,
                  o_ref):
    # Pooling: weighted scatter-add fine -> coarse, expressed as a dense matmul.
    h = jnp.dot(p_ref[...], x_ref[...], preferred_element_type=jnp.float32)
    a = a_ref[...]  # dense point<->point adjacency on the coarse node set

    def graphconv(h_f32, w_cat_ref, b_ref):
        # 2 MXU matmuls per layer:
        #   agg = A @ h
        #   y   = [h, agg] @ [W_root; W_nbr] + b
        h_bf = h_f32.astype(jnp.bfloat16)
        agg = jnp.dot(a, h_bf, preferred_element_type=jnp.float32)
        cat = jnp.concatenate([h_bf, agg.astype(jnp.bfloat16)], axis=-1)
        return jnp.dot(cat, w_cat_ref[...],
                       preferred_element_type=jnp.float32) + b_ref[...]

    h = graphconv(h, w1_ref, b1_ref)
    h = graphconv(h, w2_ref, b2_ref)
    h = graphconv(h, w3_ref, b3_ref)
    h = graphconv(h, w4_ref, b4_ref)

    # Unpooling: coarse -> fine.
    o_ref[...] = jnp.dot(u_ref[...], h.astype(jnp.bfloat16),
                         preferred_element_type=jnp.float32).astype(o_ref.dtype)


# ----------------------------------------------------------------------------
# Scatter-free dense operator construction (MXU/VPU friendly, no .at[].add)
# ----------------------------------------------------------------------------
def _dense_from_edges(edge_index, edge_attr, n_dst, n_src):
    """M[dst, src] = sum of edge_attr over edges src->dst, via one-hot matmul."""
    src, dst = edge_index[0], edge_index[1]
    oh_dst = jax.nn.one_hot(dst, n_dst, dtype=jnp.float32)  # [E, n_dst]
    oh_src = jax.nn.one_hot(src, n_src, dtype=jnp.float32)  # [E, n_src]
    return jnp.dot((edge_attr.astype(jnp.float32)[:, None] * oh_dst).T, oh_src)


def _pad2(x, rows, cols):
    return jnp.pad(x, ((0, rows - x.shape[0]), (0, cols - x.shape[1])))


def _pack_layer(p, c_pad):
    """Concatenate [W_root; W_nbr] (zero-padded to c_pad lanes) once, in bf16."""
    wr = _pad2(p["w_root"], c_pad, c_pad)
    wn = _pad2(p["w_nbr"], c_pad, c_pad)
    w_cat = jnp.concatenate([wr, wn], axis=0).astype(jnp.bfloat16)   # [2*c_pad, c_pad]
    b = _pad2(p["bias"], 1, c_pad).astype(jnp.float32)               # [1, c_pad]
    return w_cat, b


def prepare_inputs(x, params, graph_data, n_coarse, c_pad=LANE):
    n_fine = x.shape[0]
    p_mat = _dense_from_edges(graph_data["pooling"]["edge_index"],
                              graph_data["pooling"]["edge_attr"],
                              n_dst=n_coarse, n_src=n_fine).astype(jnp.bfloat16)
    a_mat = _dense_from_edges(graph_data["pointPoint"]["edge_index"],
                              graph_data["pointPoint"]["edge_attr"],
                              n_dst=n_coarse, n_src=n_coarse).astype(jnp.bfloat16)
    u_mat = _dense_from_edges(graph_data["unpooling"]["edge_index"],
                              graph_data["unpooling"]["edge_attr"],
                              n_dst=n_fine, n_src=n_coarse).astype(jnp.bfloat16)
    x_pad = _pad2(x, n_fine, c_pad).astype(jnp.bfloat16)
    packed = [_pack_layer(params[f"layer{i}"], c_pad) for i in range(1, 5)]
    return x_pad, p_mat, a_mat, u_mat, packed


# ----------------------------------------------------------------------------
# Forward pass: one fused pallas_call
# ----------------------------------------------------------------------------
def conv_block4_forward(x, params, graph_data, *, n_coarse, c_pad=LANE):
    n_fine = x.shape[0]
    c_out = params["layer1"]["w_root"].shape[1]

    x_pad, p_mat, a_mat, u_mat, packed = prepare_inputs(
        x, params, graph_data, n_coarse, c_pad)

    flat = []
    for w, b in packed:
        flat += [w, b]

    vmem = pl.BlockSpec(memory_space=pltpu.MemorySpace.VMEM)
    n_inputs = 4 + len(flat)

    # advisory cost estimate (pooling + 4 layers + unpooling)
    flops = (2 * n_coarse * n_fine * c_pad
             + 4 * (2 * n_coarse * n_coarse * c_pad
                    + 2 * n_coarse * (2 * c_pad) * c_pad)
             + 2 * n_fine * n_coarse * c_pad)
    bytes_accessed = int(
        sum(a.size * a.dtype.itemsize
            for a in (x_pad, p_mat, a_mat, u_mat, *flat))
        + n_fine * c_pad * 4)

    out_pad = pl.pallas_call(
        _block_kernel,
        out_shape=jax.ShapeDtypeStruct((n_fine, c_pad), jnp.float32),
        in_specs=[vmem] * n_inputs,
        out_specs=vmem,
        cost_estimate=pl.CostEstimate(flops=flops, transcendentals=0,
                                      bytes_accessed=bytes_accessed),
    )(x_pad, p_mat, a_mat, u_mat, *flat)

    return out_pad[:, :c_out]


# ----------------------------------------------------------------------------
# Pure-JAX reference of the same math / same operand precision
# ----------------------------------------------------------------------------
def _ref_from_packed(x_pad, p_mat, a_mat, u_mat, packed):
    f32 = lambda t: t.astype(jnp.float32)
    h = f32(p_mat) @ f32(x_pad)
    a = f32(a_mat)
    for w, b in packed:
        h_bf = h.astype(jnp.bfloat16)
        agg = a @ f32(h_bf)
        cat = jnp.concatenate([f32(h_bf), f32(agg.astype(jnp.bfloat16))], axis=-1)
        h = cat @ f32(w) + b
    return f32(u_mat) @ f32(h.astype(jnp.bfloat16))


# ----------------------------------------------------------------------------
# Deterministic parameter / input construction
# ----------------------------------------------------------------------------
def init_params(key, in_channels, out_channels):
    def layer(k, cin, cout):
        k1, k2, k3 = jax.random.split(k, 3)
        s = 1.0 / (cin ** 0.5)
        return {
            "w_root": jax.random.uniform(k1, (cin, cout), jnp.float32, -s, s),
            "w_nbr":  jax.random.uniform(k2, (cin, cout), jnp.float32, -s, s),
            "bias":   jax.random.uniform(k3, (1, cout), jnp.float32, -s, s),
        }
    ks = jax.random.split(key, 4)
    return {
        "layer1": layer(ks[0], in_channels, out_channels),
        "layer2": layer(ks[1], out_channels, out_channels),
        "layer3": layer(ks[2], out_channels, out_channels),
        "layer4": layer(ks[3], out_channels, out_channels),
    }


def make_graph(key, n_src, n_dst, n_edges):
    k1, k2, k3 = jax.random.split(key, 3)
    src = jax.random.randint(k1, (n_edges,), 0, n_src, jnp.int32)
    dst = jax.random.randint(k2, (n_edges,), 0, n_dst, jnp.int32)
    attr = jax.random.uniform(k3, (n_edges,), jnp.float32, 0.1, 1.0)
    return {"edge_index": jnp.stack([src, dst]), "edge_attr": attr}


if __name__ == "__main__":
    key = jax.random.PRNGKey(0)
    k_x, k_p, k_pp, k_pool, k_unpool = jax.random.split(key, 5)

    n_fine, n_coarse = 32, 16      # fine mesh points / pooled (coarse) points
    in_channels, out_channels = 4, 8

    x = jax.random.normal(k_x, (n_fine, in_channels), jnp.float32)
    params = init_params(k_p, in_channels, out_channels)
    graph_data = {
        "pointPoint": make_graph(k_pp,     n_src=n_coarse, n_dst=n_coarse, n_edges=96),
        "pooling":    make_graph(k_pool,   n_src=n_fine,   n_dst=n_coarse, n_edges=64),
        "unpooling":  make_graph(k_unpool, n_src=n_coarse, n_dst=n_fine,   n_edges=64),
    }

    fwd = jax.jit(functools.partial(conv_block4_forward, n_coarse=n_coarse))
    out = fwd(x, params, graph_data)
    jax.block_until_ready(out)

    # sanity check against a pure-JAX reference of the same math & precision
    x_pad, p_mat, a_mat, u_mat, packed = prepare_inputs(
        x, params, graph_data, n_coarse)
    ref = _ref_from_packed(x_pad, p_mat, a_mat, u_mat, packed)[:, :out_channels]

    assert out.shape == (n_fine, out_channels)
    assert jnp.allclose(out, ref, atol=1e-2, rtol=1e-2), \
        float(jnp.max(jnp.abs(out - ref)))

    print("KERNEL_OK")
</pallas_src>

<mosaic_0001>
module attributes {stable_mosaic.version = 11 : i64} {
  func.func @_block_kernel(%arg0: memref<32x128xbf16, #tpu.memory_space<vmem>>, %arg1: memref<16x32xbf16, #tpu.memory_space<vmem>>, %arg2: memref<16x16xbf16, #tpu.memory_space<vmem>>, %arg3: memref<32x16xbf16, #tpu.memory_space<vmem>>, %arg4: memref<256x128xbf16, #tpu.memory_space<vmem>>, %arg5: memref<1x128xf32, #tpu.memory_space<vmem>>, %arg6: memref<256x128xbf16, #tpu.memory_space<vmem>>, %arg7: memref<1x128xf32, #tpu.memory_space<vmem>>, %arg8: memref<256x128xbf16, #tpu.memory_space<vmem>>, %arg9: memref<1x128xf32, #tpu.memory_space<vmem>>, %arg10: memref<256x128xbf16, #tpu.memory_space<vmem>>, %arg11: memref<1x128xf32, #tpu.memory_space<vmem>>, %arg12: memref<32x128xf32, #tpu.memory_space<vmem>>) attributes {dimension_semantics = [], scalar_prefetch = 0 : i64, scratch_operands = 0 : i64, tpu.core_type = #tpu.core_type<tc>} {
    %c0 = arith.constant 0 : index
    %c0_0 = arith.constant 0 : index
    %0 = vector.load %arg1[%c0, %c0_0] : memref<16x32xbf16, #tpu.memory_space<vmem>>, vector<16x32xbf16>
    %c0_1 = arith.constant 0 : index
    %c0_2 = arith.constant 0 : index
    %1 = vector.load %arg0[%c0_1, %c0_2] : memref<32x128xbf16, #tpu.memory_space<vmem>>, vector<32x128xbf16>
    %cst = arith.constant dense<0.000000e+00> : vector<16x128xf32>
    %2 = tpu.matmul %0, %1, %cst {dimension_numbers = #tpu.dot_dimension_numbers<[1], [0], [0], [1], [0, 0, 1, 1], [], []>} : vector<16x32xbf16>, vector<32x128xbf16>, vector<16x128xf32> -> vector<16x128xf32>
    %c0_3 = arith.constant 0 : index
    %c0_4 = arith.constant 0 : index
    %3 = vector.load %arg2[%c0_3, %c0_4] : memref<16x16xbf16, #tpu.memory_space<vmem>>, vector<16x16xbf16>
    %4 = arith.truncf %2 : vector<16x128xf32> to vector<16x128xbf16>
    %cst_5 = arith.constant dense<0.000000e+00> : vector<16x128xf32>
    %5 = tpu.matmul %3, %4, %cst_5 {dimension_numbers = #tpu.dot_dimension_numbers<[1], [0], [0], [1], [0, 0, 1, 1], [], []>} : vector<16x16xbf16>, vector<16x128xbf16>, vector<16x128xf32> -> vector<16x128xf32>
    %6 = arith.truncf %5 : vector<16x128xf32> to vector<16x128xbf16>
    %7 = tpu.concatenate %4, %6 in 1 : vector<16x128xbf16>, vector<16x128xbf16> -> vector<16x256xbf16>
    %c0_6 = arith.constant 0 : index
    %c0_7 = arith.constant 0 : index
    %8 = vector.load %arg4[%c0_6, %c0_7] : memref<256x128xbf16, #tpu.memory_space<vmem>>, vector<256x128xbf16>
    %cst_8 = arith.constant dense<0.000000e+00> : vector<16x128xf32>
    %9 = tpu.matmul %7, %8, %cst_8 {dimension_numbers = #tpu.dot_dimension_numbers<[1], [0], [0], [1], [0, 0, 1, 1], [], []>} : vector<16x256xbf16>, vector<256x128xbf16>, vector<16x128xf32> -> vector<16x128xf32>
    %c0_9 = arith.constant 0 : index
    %c0_10 = arith.constant 0 : index
    %10 = vector.load %arg5[%c0_9, %c0_10] : memref<1x128xf32, #tpu.memory_space<vmem>>, vector<1x128xf32>
    %11 = vector.broadcast %10 : vector<1x128xf32> to vector<16x128xf32>
    %12 = arith.addf %9, %11 : vector<16x128xf32>
    %13 = arith.truncf %12 : vector<16x128xf32> to vector<16x128xbf16>
    %cst_11 = arith.constant dense<0.000000e+00> : vector<16x128xf32>
    %14 = tpu.matmul %3, %13, %cst_11 {dimension_numbers = #tpu.dot_dimension_numbers<[1], [0], [0], [1], [0, 0, 1, 1], [], []>} : vector<16x16xbf16>, vector<16x128xbf16>, vector<16x128xf32> -> vector<16x128xf32>
    %15 = arith.truncf %14 : vector<16x128xf32> to vector<16x128xbf16>
    %16 = tpu.concatenate %13, %15 in 1 : vector<16x128xbf16>, vector<16x128xbf16> -> vector<16x256xbf16>
    %c0_12 = arith.constant 0 : index
    %c0_13 = arith.constant 0 : index
    %17 = vector.load %arg6[%c0_12, %c0_13] : memref<256x128xbf16, #tpu.memory_space<vmem>>, vector<256x128xbf16>
    %cst_14 = arith.constant dense<0.000000e+00> : vector<16x128xf32>
    %18 = tpu.matmul %16, %17, %cst_14 {dimension_numbers = #tpu.dot_dimension_numbers<[1], [0], [0], [1], [0, 0, 1, 1], [], []>} : vector<16x256xbf16>, vector<256x128xbf16>, vector<16x128xf32> -> vector<16x128xf32>
    %c0_15 = arith.constant 0 : index
    %c0_16 = arith.constant 0 : index
    %19 = vector.load %arg7[%c0_15, %c0_16] : memref<1x128xf32, #tpu.memory_space<vmem>>, vector<1x128xf32>
    %20 = vector.broadcast %19 : vector<1x128xf32> to vector<16x128xf32>
    %21 = arith.addf %18, %20 : vector<16x128xf32>
    %22 = arith.truncf %21 : vector<16x128xf32> to vector<16x128xbf16>
    %cst_17 = arith.constant dense<0.000000e+00> : vector<16x128xf32>
    %23 = tpu.matmul %3, %22, %cst_17 {dimension_numbers = #tpu.dot_dimension_numbers<[1], [0], [0], [1], [0, 0, 1, 1], [], []>} : vector<16x16xbf16>, vector<16x128xbf16>, vector<16x128xf32> -> vector<16x128xf32>
    %24 = arith.truncf %23 : vector<16x128xf32> to vector<16x128xbf16>
    %25 = tpu.concatenate %22, %24 in 1 : vector<16x128xbf16>, vector<16x128xbf16> -> vector<16x256xbf16>
    %c0_18 = arith.constant 0 : index
    %c0_19 = arith.constant 0 : index
    %26 = vector.load %arg8[%c0_18, %c0_19] : memref<256x128xbf16, #tpu.memory_space<vmem>>, vector<256x128xbf16>
    %cst_20 = arith.constant dense<0.000000e+00> : vector<16x128xf32>
    %27 = tpu.matmul %25, %26, %cst_20 {dimension_numbers = #tpu.dot_dimension_numbers<[1], [0], [0], [1], [0, 0, 1, 1], [], []>} : vector<16x256xbf16>, vector<256x128xbf16>, vector<16x128xf32> -> vector<16x128xf32>
    %c0_21 = arith.constant 0 : index
    %c0_22 = arith.constant 0 : index
    %28 = vector.load %arg9[%c0_21, %c0_22] : memref<1x128xf32, #tpu.memory_space<vmem>>, vector<1x128xf32>
    %29 = vector.broadcast %28 : vector<1x128xf32> to vector<16x128xf32>
    %30 = arith.addf %27, %29 : vector<16x128xf32>
    %31 = arith.truncf %30 : vector<16x128xf32> to vector<16x128xbf16>
    %cst_23 = arith.constant dense<0.000000e+00> : vector<16x128xf32>
    %32 = tpu.matmul %3, %31, %cst_23 {dimension_numbers = #tpu.dot_dimension_numbers<[1], [0], [0], [1], [0, 0, 1, 1], [], []>} : vector<16x16xbf16>, vector<16x128xbf16>, vector<16x128xf32> -> vector<16x128xf32>
    %33 = arith.truncf %32 : vector<16x128xf32> to vector<16x128xbf16>
    %34 = tpu.concatenate %31, %33 in 1 : vector<16x128xbf16>, vector<16x128xbf16> -> vector<16x256xbf16>
    %c0_24 = arith.constant 0 : index
    %c0_25 = arith.constant 0 : index
    %35 = vector.load %arg10[%c0_24, %c0_25] : memref<256x128xbf16, #tpu.memory_space<vmem>>, vector<256x128xbf16>
    %cst_26 = arith.constant dense<0.000000e+00> : vector<16x128xf32>
    %36 = tpu.matmul %34, %35, %cst_26 {dimension_numbers = #tpu.dot_dimension_numbers<[1], [0], [0], [1], [0, 0, 1, 1], [], []>} : vector<16x256xbf16>, vector<256x128xbf16>, vector<16x128xf32> -> vector<16x128xf32>
    %c0_27 = arith.constant 0 : index
    %c0_28 = arith.constant 0 : index
    %37 = vector.load %arg11[%c0_27, %c0_28] : memref<1x128xf32, #tpu.memory_space<vmem>>, vector<1x128xf32>
    %38 = vector.broadcast %37 : vector<1x128xf32> to vector<16x128xf32>
    %39 = arith.addf %36, %38 : vector<16x128xf32>
    %c0_29 = arith.constant 0 : index
    %c0_30 = arith.constant 0 : index
    %40 = vector.load %arg3[%c0_29, %c0_30] : memref<32x16xbf16, #tpu.memory_space<vmem>>, vector<32x16xbf16>
    %41 = arith.truncf %39 : vector<16x128xf32> to vector<16x128xbf16>
    %cst_31 = arith.constant dense<0.000000e+00> : vector<32x128xf32>
    %42 = tpu.matmul %40, %41, %cst_31 {dimension_numbers = #tpu.dot_dimension_numbers<[1], [0], [0], [1], [0, 0, 1, 1], [], []>} : vector<32x16xbf16>, vector<16x128xbf16>, vector<32x128xf32> -> vector<32x128xf32>
    %c0_32 = arith.constant 0 : index
    %c0_33 = arith.constant 0 : index
    %43 = vector.load %arg12[%c0_32, %c0_33] : memref<32x128xf32, #tpu.memory_space<vmem>>, vector<32x128xf32>
    tpu.vector_store %arg12[%c0_32, %c0_33], %42 {strides = array<i32>} : memref<32x128xf32, #tpu.memory_space<vmem>>, vector<32x128xf32>,
    return
  }
}

</mosaic_0001>

<llo_original>
// kernel: conv_block4_forward.1
$region0: #{conv_block4_forward.1}
  #allocation0 [shape = 'u32[]', space=smem, size = 0x4, offset = 0x4, fixed_abs, tag = 'smem constant byte address 0x4 - core index']
  #allocation1 [shape = 'u32[144,128]{1,0:T(1,128)}', space=vmem, size = 0x12000, scoped, tag = 'internal scratch']
  %s0 = inlined_call_operand.vmem [shape: bf16[32,128], index: 0, kind: input, shape index: {}]
  %s1 = inlined_call_operand.vmem [shape: bf16[16,32], index: 1, kind: input, shape index: {}]
  %s2 = inlined_call_operand.vmem [shape: bf16[16,16], index: 2, kind: input, shape index: {}]
  %s3 = inlined_call_operand.vmem [shape: bf16[32,16], index: 3, kind: input, shape index: {}]
  %s4 = inlined_call_operand.vmem [shape: bf16[256,128], index: 4, kind: input, shape index: {}]
  %s5 = inlined_call_operand.vmem [shape: f32[1,128], index: 5, kind: input, shape index: {}]
  %s6 = inlined_call_operand.vmem [shape: bf16[256,128], index: 6, kind: input, shape index: {}]
  %s7 = inlined_call_operand.vmem [shape: f32[1,128], index: 7, kind: input, shape index: {}]
  %s8 = inlined_call_operand.vmem [shape: bf16[256,128], index: 8, kind: input, shape index: {}]
  %s9 = inlined_call_operand.vmem [shape: f32[1,128], index: 9, kind: input, shape index: {}]
  %s10 = inlined_call_operand.vmem [shape: bf16[256,128], index: 10, kind: input, shape index: {}]
  %s11 = inlined_call_operand.vmem [shape: f32[1,128], index: 11, kind: input, shape index: {}]
  %s12 = inlined_call_operand.vmem [shape: f32[32,128], index: 12, kind: output, shape index: {}]
  %s13 = sld [smem:[#allocation0]]
  $region58: #{conv_block4_forward.1} parent=0
    _
  %s15 = ssub.s32 1, %s13
  %s16 = scalar_select 0, %s15, %s13
  // Predicated region
  $region2: #{conv_block4_forward.1} parent=0 // pred_check
    _
  $region3: #{conv_block4_forward.1} parent=0 // pred_check_branch
    %18 = sbr.rel (0) target = $region5
  $region4: #{conv_block4_forward.1} parent=0 // pred_region
    _
  $region5: #{conv_block4_forward.1} parent=0 // pred_fallthru
    _
  // Predicated region
  $region6: #{conv_block4_forward.1} parent=0 // pred_check
    _
  $region7: #{conv_block4_forward.1} parent=0 // pred_check_branch
    %20 = sbr.rel (0) target = $region9
  $region8: #{conv_block4_forward.1} parent=0 // pred_region
    _
  $region9: #{conv_block4_forward.1} parent=0 // pred_fallthru
    _
  // Predicated region
  $region10: #{conv_block4_forward.1} parent=0 // pred_check
    _
  $region11: #{conv_block4_forward.1} parent=0 // pred_check_branch
    %22 = sbr.rel (0) target = $region13
  $region12: #{conv_block4_forward.1} parent=0 // pred_region
    _
  $region13: #{conv_block4_forward.1} parent=0 // pred_fallthru
    _
  // Predicated region
  $region14: #{conv_block4_forward.1} parent=0 // pred_check
    _
  $region15: #{conv_block4_forward.1} parent=0 // pred_check_branch
    %24 = sbr.rel (0) target = $region17
  $region16: #{conv_block4_forward.1} parent=0 // pred_region
    _
  $region17: #{conv_block4_forward.1} parent=0 // pred_fallthru
    _
  // Predicated region
  $region18: #{conv_block4_forward.1} parent=0 // pred_check
    _
  $region19: #{conv_block4_forward.1} parent=0 // pred_check_branch
    %26 = sbr.rel (0) target = $region21
  $region20: #{conv_block4_forward.1} parent=0 // pred_region
    _
  $region21: #{conv_block4_forward.1} parent=0 // pred_fallthru
    _
  // Predicated region
  $region22: #{conv_block4_forward.1} parent=0 // pred_check
    _
  $region23: #{conv_block4_forward.1} parent=0 // pred_check_branch
    %28 = sbr.rel (0) target = $region25
  $region24: #{conv_block4_forward.1} parent=0 // pred_region
    _
  $region25: #{conv_block4_forward.1} parent=0 // pred_fallthru
    _
  // Predicated region
  $region26: #{conv_block4_forward.1} parent=0 // pred_check
    _
  $region27: #{conv_block4_forward.1} parent=0 // pred_check_branch
    %30 = sbr.rel (0) target = $region29
  $region28: #{conv_block4_forward.1} parent=0 // pred_region
    _
  $region29: #{conv_block4_forward.1} parent=0 // pred_fallthru
    _
  // Predicated region
  $region30: #{conv_block4_forward.1} parent=0 // pred_check
    _
  $region31: #{conv_block4_forward.1} parent=0 // pred_check_branch
    %32 = sbr.rel (0) target = $region33
  $region32: #{conv_block4_forward.1} parent=0 // pred_region
    _
  $region33: #{conv_block4_forward.1} parent=0 // pred_fallthru
    _
  // Predicated region
  $region34: #{conv_block4_forward.1} parent=0 // pred_check
    _
  $region35: #{conv_block4_forward.1} parent=0 // pred_check_branch
    %34 = sbr.rel (0) target = $region37
  $region36: #{conv_block4_forward.1} parent=0 // pred_region
    _
  $region37: #{conv_block4_forward.1} parent=0 // pred_fallthru
    _
  // Predicated region
  $region38: #{conv_block4_forward.1} parent=0 // pred_check
    _
  $region39: #{conv_block4_forward.1} parent=0 // pred_check_branch
    %36 = sbr.rel (0) target = $region41
  $region40: #{conv_block4_forward.1} parent=0 // pred_region
    _
  $region41: #{conv_block4_forward.1} parent=0 // pred_fallthru
    _
  // Predicated region
  $region42: #{conv_block4_forward.1} parent=0 // pred_check
    _
  $region43: #{conv_block4_forward.1} parent=0 // pred_check_branch
    %38 = sbr.rel (0) target = $region45
  $region44: #{conv_block4_forward.1} parent=0 // pred_region
    _
  $region45: #{conv_block4_forward.1} parent=0 // pred_fallthru
    _
  // Predicated region
  $region46: #{conv_block4_forward.1} parent=0 // pred_check
    _
  $region47: #{conv_block4_forward.1} parent=0 // pred_check_branch
    %40 = sbr.rel (0) target = $region49
  $region48: #{conv_block4_forward.1} parent=0 // pred_region
    _
  $region49: #{conv_block4_forward.1} parent=0 // pred_fallthru
    _
  %v42 = vld [vmem:[%s1] sm:$0xf]
  %v43 = vld [vmem:[%s1 + $0x4] sm:$0xf]
  %v44 = vld [vmem:[%s0] sm:$0xf]
  %v45 = vld [vmem:[%s0 + $0x4] sm:$0xf]
  %v46 = vld [vmem:[%s0 + $0x8] sm:$0xf]
  %v47 = vld [vmem:[%s0 + $0xc] sm:$0xf]
  %v50 = vunpack.c.l.b16 %v42
  %v51 = vunpack.c.l.b16 %v43
  %v52 = vpack.c.b16 %v51, %v50
  %v57 = vunpack.c.l.b16 %v44
  %v58 = vunpack.c.l.b16 %v45
  %v59 = vunpack.c.l.b16 %v46
  %v60 = vunpack.c.l.b16 %v47
  %v61 = vpack.c.b16 %v58, %v57
  %v62 = vpack.c.b16 %v60, %v59
  %vm65 = vcmask 261120
  %v67 = vsel %vm65, %v52, 0
  %69 = vmatprep.subr.bf16.mxu0 0
  %70 = vmatpush1.bf16.msra.mxu0 0
  %71 = vmatprep.subr.bf16.mxu0 0
  %72 = vmatpush1.bf16.msra.mxu0 0
  %73 = vmatprep.subr.bf16.mxu0 0
  %74 = vmatpush1.bf16.msra.mxu0 0
  %75 = vmatprep.subr.bf16.mxu0 0
  %76 = vmatpush1.bf16.msra.mxu0 0
  %77 = vmatprep.subr.bf16.mxu0 0
  %78 = vmatpush1.bf16.msra.mxu0 0
  %79 = vmatprep.subr.bf16.mxu0 0
  %80 = vmatpush1.bf16.msra.mxu0 0
  %81 = vmatprep.subr.bf16.mxu0 0
  %82 = vmatpush1.bf16.msra.mxu0 %v62
  %83 = vmatprep.subr.bf16.mxu0 0
  %84 = vmatpush1.bf16.msra.mxu0 %v61
  %85 = vmatprep.subr.bf16.mxu0 0
  %86 = vmatpush2.bf16.msra.mxu0 0
  %87 = vmatprep.subr.bf16.mxu0 0
  %88 = vmatpush2.bf16.msra.mxu0 0
  %89 = vmatprep.subr.bf16.mxu0 0
  %90 = vmatpush2.bf16.msra.mxu0 0
  %91 = vmatprep.subr.bf16.mxu0 0
  %92 = vmatpush2.bf16.msra.mxu0 0
  %93 = vmatprep.subr.bf16.mxu0 0
  %94 = vmatpush2.bf16.msra.mxu0 0
  %95 = vmatprep.subr.bf16.mxu0 0
  %96 = vmatpush2.bf16.msra.mxu0 0
  %97 = vmatprep.subr.bf16.mxu0 0
  %98 = vmatpush2.bf16.msra.mxu0 0
  %99 = vmatprep.subr.bf16.mxu0 0
  %100 = vmatpush2.bf16.msra.mxu0 0
  %101 = vmatprep.mubr.bf16.mxu0 0
  %102 = vmatmul.mubr.bf16.gmra.mxu0 %v67
  %v103 = vpop.f32.mrf.mxu0
  %v104 = vadd.f32 0.0, %v103
  %v105 = vpop.f32.mrf.mxu0
  %v106 = vpop.f32.mrf.mxu0
  %v107 = vadd.f32 0.0, %v106
  %v108 = vpop.f32.mrf.mxu0
  %109 = vdwg.mxu0
  %v110 = vld [vmem:[%s2] sm:$0xf]
  %v111 = vld [vmem:[%s2 + $0x4] sm:$0xf]
  %v112 = vpack.c.bf16 %v107, %v104
  %v115 = vunpack.c.l.b16 %v110
  %v116 = vunpack.c.l.b16 %v111
  %v117 = vpack.c.b16 %v116, %v115
  %vm118 = vcmask 130048
  %v120 = vsel %vm118, %v117, 0
  %122 = vmatprep.subr.bf16.mxu0 0
  %123 = vmatpush1.bf16.msra.mxu0 0
  %124 = vmatprep.subr.bf16.mxu0 0
  %125 = vmatpush1.bf16.msra.mxu0 0
  %126 = vmatprep.subr.bf16.mxu0 0
  %127 = vmatpush1.bf16.msra.mxu0 0
  %128 = vmatprep.subr.bf16.mxu0 0
  %129 = vmatpush1.bf16.msra.mxu0 0
  %130 = vmatprep.subr.bf16.mxu0 0
  %131 = vmatpush1.bf16.msra.mxu0 0
  %132 = vmatprep.subr.bf16.mxu0 0
  %133 = vmatpush1.bf16.msra.mxu0 0
  %134 = vmatprep.subr.bf16.mxu0 0
  %135 = vmatpush1.bf16.msra.mxu0 0
  %136 = vmatprep.subr.bf16.mxu0 0
  %137 = vmatpush1.bf16.msra.mxu0 %v112
  %138 = vmatprep.subr.bf16.mxu0 0
  %139 = vmatpush2.bf16.msra.mxu0 0
  %140 = vmatprep.subr.bf16.mxu0 0
  %141 = vmatpush2.bf16.msra.mxu0 0
  %142 = vmatprep.subr.bf16.mxu0 0
  %143 = vmatpush2.bf16.msra.mxu0 0
  %144 = vmatprep.subr.bf16.mxu0 0
  %145 = vmatpush2.bf16.msra.mxu0 0
  %146 = vmatprep.subr.bf16.mxu0 0
  %147 = vmatpush2.bf16.msra.mxu0 0
  %148 = vmatprep.subr.bf16.mxu0 0
  %149 = vmatpush2.bf16.msra.mxu0 0
  %150 = vmatprep.subr.bf16.mxu0 0
  %151 = vmatpush2.bf16.msra.mxu0 0
  %152 = vmatprep.subr.bf16.mxu0 0
  %153 = vmatpush2.bf16.msra.mxu0 0
  %154 = vmatprep.mubr.bf16.mxu0 0
  %155 = vmatmul.mubr.bf16.gmra.mxu0 %v120
  %v156 = vpop.f32.mrf.mxu0
  %v157 = vadd.f32 0.0, %v156
  %v158 = vpop.f32.mrf.mxu0
  %v159 = vpop.f32.mrf.mxu0
  %v160 = vadd.f32 0.0, %v159
  %v161 = vpop.f32.mrf.mxu0
  %162 = vdwg.mxu0
  %v163 = vpack.c.bf16 %v160, %v157
  %v164 = vld [vmem:[%s4] sm:$0xf]
  %v165 = vld [vmem:[%s4 + $0x4] sm:$0xf]
  %v166 = vld [vmem:[%s4 + $0x8] sm:$0xf]
  %v167 = vld [vmem:[%s4 + $0xc] sm:$0xf]
  %v168 = vld [vmem:[%s4 + $0x10] sm:$0xf]
  %v169 = vld [vmem:[%s4 + $0x14] sm:$0xf]
  %v170 = vld [vmem:[%s4 + $0x18] sm:$0xf]
  %v171 = vld [vmem:[%s4 + $0x1c] sm:$0xf]
  %v172 = vld [vmem:[%s4 + $0x20] sm:$0xf]
  %v173 = vld [vmem:[%s4 + $0x24] sm:$0xf]
  %v174 = vld [vmem:[%s4 + $0x28] sm:$0xf]
  %v175 = vld [vmem:[%s4 + $0x2c] sm:$0xf]
  %v176 = vld [vmem:[%s4 + $0x30] sm:$0xf]
  %v177 = vld [vmem:[%s4 + $0x34] sm:$0xf]
  %v178 = vld [vmem:[%s4 + $0x38] sm:$0xf]
  %v179 = vld [vmem:[%s4 + $0x3c] sm:$0xf]
  %v180 = vld [vmem:[%s4 + $0x40] sm:$0xf]
  %v181 = vld [vmem:[%s4 + $0x44] sm:$0xf]
  %v182 = vld [vmem:[%s4 + $0x48] sm:$0xf]
  %v183 = vld [vmem:[%s4 + $0x4c] sm:$0xf]
  %v184 = vld [vmem:[%s4 + $0x50] sm:$0xf]
  %v185 = vld [vmem:[%s4 + $0x54] sm:$0xf]
  %v186 = vld [vmem:[%s4 + $0x58] sm:$0xf]
  %v187 = vld [vmem:[%s4 + $0x5c] sm:$0xf]
  %v188 = vld [vmem:[%s4 + $0x60] sm:$0xf]
  %v189 = vld [vmem:[%s4 + $0x64] sm:$0xf]
  %v190 = vld [vmem:[%s4 + $0x68] sm:$0xf]
  %v191 = vld [vmem:[%s4 + $0x6c] sm:$0xf]
  %v192 = vld [vmem:[%s4 + $0x70] sm:$0xf]
  %v193 = vld [vmem:[%s4 + $0x74] sm:$0xf]
  %v194 = vld [vmem:[%s4 + $0x78] sm:$0xf]
  %v195 = vld [vmem:[%s4 + $0x7c] sm:$0xf]
  %v196 = vld [vmem:[%s5] sm:$0x1]
  %v198 = vlaneseq
  %v199 = vshrl.u32 %v198, 7
  %v200 = vsub.s32 0, %v199
  %v201 = vrot.slane %v196, %v200
  %v235 = vunpack.c.l.b16 %v164
  %v236 = vunpack.c.l.b16 %v165
  %v237 = vunpack.c.l.b16 %v166
  %v238 = vunpack.c.l.b16 %v167
  %v239 = vunpack.c.l.b16 %v168
  %v240 = vunpack.c.l.b16 %v169
  %v241 = vunpack.c.l.b16 %v170
  %v242 = vunpack.c.l.b16 %v171
  %v243 = vunpack.c.l.b16 %v172
  %v244 = vunpack.c.l.b16 %v173
  %v245 = vunpack.c.l.b16 %v174
  %v246 = vunpack.c.l.b16 %v175
  %v247 = vunpack.c.l.b16 %v176
  %v248 = vunpack.c.l.b16 %v177
  %v249 = vunpack.c.l.b16 %v178
  %v250 = vunpack.c.l.b16 %v179
  %v251 = vunpack.c.l.b16 %v180
  %v252 = vunpack.c.l.b16 %v181
  %v253 = vunpack.c.l.b16 %v182
  %v254 = vunpack.c.l.b16 %v183
  %v255 = vunpack.c.l.b16 %v184
  %v256 = vunpack.c.l.b16 %v185
  %v257 = vunpack.c.l.b16 %v186
  %v258 = vunpack.c.l.b16 %v187
  %v259 = vunpack.c.l.b16 %v188
  %v260 = vunpack.c.l.b16 %v189
  %v261 = vunpack.c.l.b16 %v190
  %v262 = vunpack.c.l.b16 %v191
  %v263 = vunpack.c.l.b16 %v192
  %v264 = vunpack.c.l.b16 %v193
  %v265 = vunpack.c.l.b16 %v194
  %v266 = vunpack.c.l.b16 %v195
  %v267 = vpack.c.b16 %v236, %v235
  %v268 = vpack.c.b16 %v238, %v237
  %v269 = vpack.c.b16 %v240, %v239
  %v270 = vpack.c.b16 %v242, %v241
  %v271 = vpack.c.b16 %v244, %v243
  %v272 = vpack.c.b16 %v246, %v245
  %v273 = vpack.c.b16 %v248, %v247
  %v274 = vpack.c.b16 %v250, %v249
  %v275 = vpack.c.b16 %v252, %v251
  %v276 = vpack.c.b16 %v254, %v253
  %v277 = vpack.c.b16 %v256, %v255
  %v278 = vpack.c.b16 %v258, %v257
  %v279 = vpack.c.b16 %v260, %v259
  %v280 = vpack.c.b16 %v262, %v261
  %v281 = vpack.c.b16 %v264, %v263
  %v282 = vpack.c.b16 %v266, %v265
  %299 = vmatprep.subr.bf16.mxu0 0
  %300 = vmatpush1.bf16.msra.mxu0 %v274
  %301 = vmatprep.subr.bf16.mxu0 0
  %302 = vmatpush1.bf16.msra.mxu0 %v273
  %303 = vmatprep.subr.bf16.mxu0 0
  %304 = vmatpush1.bf16.msra.mxu0 %v272
  %305 = vmatprep.subr.bf16.mxu0 0
  %306 = vmatpush1.bf16.msra.mxu0 %v271
  %307 = vmatprep.subr.bf16.mxu0 0
  %308 = vmatpush1.bf16.msra.mxu0 %v270
  %309 = vmatprep.subr.bf16.mxu0 0
  %310 = vmatpush1.bf16.msra.mxu0 %v269
  %311 = vmatprep.subr.bf16.mxu0 0
  %312 = vmatpush1.bf16.msra.mxu0 %v268
  %313 = vmatprep.subr.bf16.mxu0 0
  %314 = vmatpush1.bf16.msra.mxu0 %v267
  %315 = vmatprep.subr.bf16.mxu0 0
  %316 = vmatpush2.bf16.msra.mxu0 %v282
  %317 = vmatprep.subr.bf16.mxu0 0
  %318 = vmatpush2.bf16.msra.mxu0 %v281
  %319 = vmatprep.subr.bf16.mxu0 0
  %320 = vmatpush2.bf16.msra.mxu0 %v280
  %321 = vmatprep.subr.bf16.mxu0 0
  %322 = vmatpush2.bf16.msra.mxu0 %v279
  %323 = vmatprep.subr.bf16.mxu0 0
  %324 = vmatpush2.bf16.msra.mxu0 %v278
  %325 = vmatprep.subr.bf16.mxu0 0
  %326 = vmatpush2.bf16.msra.mxu0 %v277
  %327 = vmatprep.subr.bf16.mxu0 0
  %328 = vmatpush2.bf16.msra.mxu0 %v276
  %329 = vmatprep.subr.bf16.mxu0 0
  %330 = vmatpush2.bf16.msra.mxu0 %v275
  %331 = vmatprep.mubr.bf16.mxu0 %v163
  %332 = vmatmul.mubr.bf16.gmra.mxu0 %v112
  %v333 = vpop.f32.mrf.mxu0
  %v334 = vadd.f32 %v201, %v333
  %v335 = vpop.f32.mrf.mxu0
  %v336 = vpop.f32.mrf.mxu0
  %v337 = vadd.f32 %v201, %v336
  %v338 = vpop.f32.mrf.mxu0
  %339 = vdwg.mxu0
  %v340 = vpack.c.bf16 %v337, %v334
  %341 = vmatprep.subr.bf16.mxu0 0
  %342 = vmatpush1.bf16.msra.mxu0 0
  %343 = vmatprep.subr.bf16.mxu0 0
  %344 = vmatpush1.bf16.msra.mxu0 0
  %345 = vmatprep.subr.bf16.mxu0 0
  %346 = vmatpush1.bf16.msra.mxu0 0
  %347 = vmatprep.subr.bf16.mxu0 0
  %348 = vmatpush1.bf16.msra.mxu0 0
  %349 = vmatprep.subr.bf16.mxu0 0
  %350 = vmatpush1.bf16.msra.mxu0 0
  %351 = vmatprep.subr.bf16.mxu0 0
  %352 = vmatpush1.bf16.msra.mxu0 0
  %353 = vmatprep.subr.bf16.mxu0 0
  %354 = vmatpush1.bf16.msra.mxu0 0
  %355 = vmatprep.subr.bf16.mxu0 0
  %356 = vmatpush1.bf16.msra.mxu0 %v340
  %357 = vmatprep.subr.bf16.mxu0 0
  %358 = vmatpush2.bf16.msra.mxu0 0
  %359 = vmatprep.subr.bf16.mxu0 0
  %360 = vmatpush2.bf16.msra.mxu0 0
  %361 = vmatprep.subr.bf16.mxu0 0
  %362 = vmatpush2.bf16.msra.mxu0 0
  %363 = vmatprep.subr.bf16.mxu0 0
  %364 = vmatpush2.bf16.msra.mxu0 0
  %365 = vmatprep.subr.bf16.mxu0 0
  %366 = vmatpush2.bf16.msra.mxu0 0
  %367 = vmatprep.subr.bf16.mxu0 0
  %368 = vmatpush2.bf16.msra.mxu0 0
  %369 = vmatprep.subr.bf16.mxu0 0
  %370 = vmatpush2.bf16.msra.mxu0 0
  %371 = vmatprep.subr.bf16.mxu0 0
  %372 = vmatpush2.bf16.msra.mxu0 0
  %373 = vmatprep.mubr.bf16.mxu0 0
  %374 = vmatmul.mubr.bf16.gmra.mxu0 %v120
  %v375 = vpop.f32.mrf.mxu0
  %v376 = vadd.f32 0.0, %v375
  %v377 = vpop.f32.mrf.mxu0
  %v378 = vpop.f32.mrf.mxu0
  %v379 = vadd.f32 0.0, %v378
  %v380 = vpop.f32.mrf.mxu0
  %381 = vdwg.mxu0
  %v382 = vpack.c.bf16 %v379, %v376
  %v383 = vld [vmem:[%s6] sm:$0xf]
  %v384 = vld [vmem:[%s6 + $0x4] sm:$0xf]
  %v385 = vld [vmem:[%s6 + $0x8] sm:$0xf]
  %v386 = vld [vmem:[%s6 + $0xc] sm:$0xf]
  %v387 = vld [vmem:[%s6 + $0x10] sm:$0xf]
  %v388 = vld [vmem:[%s6 + $0x14] sm:$0xf]
  %v389 = vld [vmem:[%s6 + $0x18] sm:$0xf]
  %v390 = vld [vmem:[%s6 + $0x1c] sm:$0xf]
  %v391 = vld [vmem:[%s6 + $0x20] sm:$0xf]
  %v392 = vld [vmem:[%s6 + $0x24] sm:$0xf]
  %v393 = vld [vmem:[%s6 + $0x28] sm:$0xf]
  %v394 = vld [vmem:[%s6 + $0x2c] sm:$0xf]
  %v395 = vld [vmem:[%s6 + $0x30] sm:$0xf]
  %v396 = vld [vmem:[%s6 + $0x34] sm:$0xf]
  %v397 = vld [vmem:[%s6 + $0x38] sm:$0xf]
  %v398 = vld [vmem:[%s6 + $0x3c] sm:$0xf]
  %v399 = vld [vmem:[%s6 + $0x40] sm:$0xf]
  %v400 = vld [vmem:[%s6 + $0x44] sm:$0xf]
  %v401 = vld [vmem:[%s6 + $0x48] sm:$0xf]
  %v402 = vld [vmem:[%s6 + $0x4c] sm:$0xf]
  %v403 = vld [vmem:[%s6 + $0x50] sm:$0xf]
  %v404 = vld [vmem:[%s6 + $0x54] sm:$0xf]
  %v405 = vld [vmem:[%s6 + $0x58] sm:$0xf]
  %v406 = vld [vmem:[%s6 + $0x5c] sm:$0xf]
  %v407 = vld [vmem:[%s6 + $0x60] sm:$0xf]
  %v408 = vld [vmem:[%s6 + $0x64] sm:$0xf]
  %v409 = vld [vmem:[%s6 + $0x68] sm:$0xf]
  %v410 = vld [vmem:[%s6 + $0x6c] sm:$0xf]
  %v411 = vld [vmem:[%s6 + $0x70] sm:$0xf]
  %v412 = vld [vmem:[%s6 + $0x74] sm:$0xf]
  %v413 = vld [vmem:[%s6 + $0x78] sm:$0xf]
  %v414 = vld [vmem:[%s6 + $0x7c] sm:$0xf]
  %v415 = vld [vmem:[%s7] sm:$0x1]
  %v417 = vlaneseq
  %v418 = vshrl.u32 %v417, 7
  %v419 = vsub.s32 0, %v418
  %v420 = vrot.slane %v415, %v419
  %v454 = vunpack.c.l.b16 %v383
  %v455 = vunpack.c.l.b16 %v384
  %v456 = vunpack.c.l.b16 %v385
  %v457 = vunpack.c.l.b16 %v386
  %v458 = vunpack.c.l.b16 %v387
  %v459 = vunpack.c.l.b16 %v388
  %v460 = vunpack.c.l.b16 %v389
  %v461 = vunpack.c.l.b16 %v390
  %v462 = vunpack.c.l.b16 %v391
  %v463 = vunpack.c.l.b16 %v392
  %v464 = vunpack.c.l.b16 %v393
  %v465 = vunpack.c.l.b16 %v394
  %v466 = vunpack.c.l.b16 %v395
  %v467 = vunpack.c.l.b16 %v396
  %v468 = vunpack.c.l.b16 %v397
  %v469 = vunpack.c.l.b16 %v398
  %v470 = vunpack.c.l.b16 %v399
  %v471 = vunpack.c.l.b16 %v400
  %v472 = vunpack.c.l.b16 %v401
  %v473 = vunpack.c.l.b16 %v402
  %v474 = vunpack.c.l.b16 %v403
  %v475 = vunpack.c.l.b16 %v404
  %v476 = vunpack.c.l.b16 %v405
  %v477 = vunpack.c.l.b16 %v406
  %v478 = vunpack.c.l.b16 %v407
  %v479 = vunpack.c.l.b16 %v408
  %v480 = vunpack.c.l.b16 %v409
  %v481 = vunpack.c.l.b16 %v410
  %v482 = vunpack.c.l.b16 %v411
  %v483 = vunpack.c.l.b16 %v412
  %v484 = vunpack.c.l.b16 %v413
  %v485 = vunpack.c.l.b16 %v414
  %v486 = vpack.c.b16 %v455, %v454
  %v487 = vpack.c.b16 %v457, %v456
  %v488 = vpack.c.b16 %v459, %v458
  %v489 = vpack.c.b16 %v461, %v460
  %v490 = vpack.c.b16 %v463, %v462
  %v491 = vpack.c.b16 %v465, %v464
  %v492 = vpack.c.b16 %v467, %v466
  %v493 = vpack.c.b16 %v469, %v468
  %v494 = vpack.c.b16 %v471, %v470
  %v495 = vpack.c.b16 %v473, %v472
  %v496 = vpack.c.b16 %v475, %v474
  %v497 = vpack.c.b16 %v477, %v476
  %v498 = vpack.c.b16 %v479, %v478
  %v499 = vpack.c.b16 %v481, %v480
  %v500 = vpack.c.b16 %v483, %v482
  %v501 = vpack.c.b16 %v485, %v484
  %518 = vmatprep.subr.bf16.mxu0 0
  %519 = vmatpush1.bf16.msra.mxu0 %v493
  %520 = vmatprep.subr.bf16.mxu0 0
  %521 = vmatpush1.bf16.msra.mxu0 %v492
  %522 = vmatprep.subr.bf16.mxu0 0
  %523 = vmatpush1.bf16.msra.mxu0 %v491
  %524 = vmatprep.subr.bf16.mxu0 0
  %525 = vmatpush1.bf16.msra.mxu0 %v490
  %526 = vmatprep.subr.bf16.mxu0 0
  %527 = vmatpush1.bf16.msra.mxu0 %v489
  %528 = vmatprep.subr.bf16.mxu0 0
  %529 = vmatpush1.bf16.msra.mxu0 %v488
  %530 = vmatprep.subr.bf16.mxu0 0
  %531 = vmatpush1.bf16.msra.mxu0 %v487
  %532 = vmatprep.subr.bf16.mxu0 0
  %533 = vmatpush1.bf16.msra.mxu0 %v486
  %534 = vmatprep.subr.bf16.mxu0 0
  %535 = vmatpush2.bf16.msra.mxu0 %v501
  %536 = vmatprep.subr.bf16.mxu0 0
  %537 = vmatpush2.bf16.msra.mxu0 %v500
  %538 = vmatprep.subr.bf16.mxu0 0
  %539 = vmatpush2.bf16.msra.mxu0 %v499
  %540 = vmatprep.subr.bf16.mxu0 0
  %541 = vmatpush2.bf16.msra.mxu0 %v498
  %542 = vmatprep.subr.bf16.mxu0 0
  %543 = vmatpush2.bf16.msra.mxu0 %v497
  %544 = vmatprep.subr.bf16.mxu0 0
  %545 = vmatpush2.bf16.msra.mxu0 %v496
  %546 = vmatprep.subr.bf16.mxu0 0
  %547 = vmatpush2.bf16.msra.mxu0 %v495
  %548 = vmatprep.subr.bf16.mxu0 0
  %549 = vmatpush2.bf16.msra.mxu0 %v494
  %550 = vmatprep.mubr.bf16.mxu0 %v382
  %551 = vmatmul.mubr.bf16.gmra.mxu0 %v340
  %v552 = vpop.f32.mrf.mxu0
  %v553 = vadd.f32 %v420, %v552
  %v554 = vpop.f32.mrf.mxu0
  %v555 = vpop.f32.mrf.mxu0
  %v556 = vadd.f32 %v420, %v555
  %v557 = vpop.f32.mrf.mxu0
  %558 = vdwg.mxu0
  %v559 = vpack.c.bf16 %v556, %v553
  %560 = vmatprep.subr.bf16.mxu0 0
  %561 = vmatpush1.bf16.msra.mxu0 0
  %562 = vmatprep.subr.bf16.mxu0 0
  %563 = vmatpush1.bf16.msra.mxu0 0
  %564 = vmatprep.subr.bf16.mxu0 0
  %565 = vmatpush1.bf16.msra.mxu0 0
  %566 = vmatprep.subr.bf16.mxu0 0
  %567 = vmatpush1.bf16.msra.mxu0 0
  %568 = vmatprep.subr.bf16.mxu0 0
  %569 = vmatpush1.bf16.msra.mxu0 0
  %570 = vmatprep.subr.bf16.mxu0 0
  %571 = vmatpush1.bf16.msra.mxu0 0
  %572 = vmatprep.subr.bf16.mxu0 0
  %573 = vmatpush1.bf16.msra.mxu0 0
  %574 = vmatprep.subr.bf16.mxu0 0
  %575 = vmatpush1.bf16.msra.mxu0 %v559
  %576 = vmatprep.subr.bf16.mxu0 0
  %577 = vmatpush2.bf16.msra.mxu0 0
  %578 = vmatprep.subr.bf16.mxu0 0
  %579 = vmatpush2.bf16.msra.mxu0 0
  %580 = vmatprep.subr.bf16.mxu0 0
  %581 = vmatpush2.bf16.msra.mxu0 0
  %582 = vmatprep.subr.bf16.mxu0 0
  %583 = vmatpush2.bf16.msra.mxu0 0
  %584 = vmatprep.subr.bf16.mxu0 0
  %585 = vmatpush2.bf16.msra.mxu0 0
  %586 = vmatprep.subr.bf16.mxu0 0
  %587 = vmatpush2.bf16.msra.mxu0 0
  %588 = vmatprep.subr.bf16.mxu0 0
  %589 = vmatpush2.bf16.msra.mxu0 0
  %590 = vmatprep.subr.bf16.mxu0 0
  %591 = vmatpush2.bf16.msra.mxu0 0
  %592 = vmatprep.mubr.bf16.mxu0 0
  %593 = vmatmul.mubr.bf16.gmra.mxu0 %v120
  %v594 = vpop.f32.mrf.mxu0
  %v595 = vadd.f32 0.0, %v594
  %v596 = vpop.f32.mrf.mxu0
  %v597 = vpop.f32.mrf.mxu0
  %v598 = vadd.f32 0.0, %v597
  %v599 = vpop.f32.mrf.mxu0
  %600 = vdwg.mxu0
  %v601 = vpack.c.bf16 %v598, %v595
  %v602 = vld [vmem:[%s8] sm:$0xf]
  %v603 = vld [vmem:[%s8 + $0x4] sm:$0xf]
  %v604 = vld [vmem:[%s8 + $0x8] sm:$0xf]
  %v605 = vld [vmem:[%s8 + $0xc] sm:$0xf]
  %v606 = vld [vmem:[%s8 + $0x10] sm:$0xf]
  %v607 = vld [vmem:[%s8 + $0x14] sm:$0xf]
  %v608 = vld [vmem:[%s8 + $0x18] sm:$0xf]
  %v609 = vld [vmem:[%s8 + $0x1c] sm:$0xf]
  %v610 = vld [vmem:[%s8 + $0x20] sm:$0xf]
  %v611 = vld [vmem:[%s8 + $0x24] sm:$0xf]
  %v612 = vld [vmem:[%s8 + $0x28] sm:$0xf]
  %v613 = vld [vmem:[%s8 + $0x2c] sm:$0xf]
  %v614 = vld [vmem:[%s8 + $0x30] sm:$0xf]
  %v615 = vld [vmem:[%s8 + $0x34] sm:$0xf]
  %v616 = vld [vmem:[%s8 + $0x38] sm:$0xf]
  %v617 = vld [vmem:[%s8 + $0x3c] sm:$0xf]
  %v618 = vld [vmem:[%s8 + $0x40] sm:$0xf]
  %v619 = vld [vmem:[%s8 + $0x44] sm:$0xf]
  %v620 = vld [vmem:[%s8 + $0x48] sm:$0xf]
  %v621 = vld [vmem:[%s8 + $0x4c] sm:$0xf]
  %v622 = vld [vmem:[%s8 + $0x50] sm:$0xf]
  %v623 = vld [vmem:[%s8 + $0x54] sm:$0xf]
  %v624 = vld [vmem:[%s8 + $0x58] sm:$0xf]
  %v625 = vld [vmem:[%s8 + $0x5c] sm:$0xf]
  %v626 = vld [vmem:[%s8 + $0x60] sm:$0xf]
  %v627 = vld [vmem:[%s8 + $0x64] sm:$0xf]
  %v628 = vld [vmem:[%s8 + $0x68] sm:$0xf]
  %v629 = vld [vmem:[%s8 + $0x6c] sm:$0xf]
  %v630 = vld [vmem:[%s8 + $0x70] sm:$0xf]
  %v631 = vld [vmem:[%s8 + $0x74] sm:$0xf]
  %v632 = vld [vmem:[%s8 + $0x78] sm:$0xf]
  %v633 = vld [vmem:[%s8 + $0x7c] sm:$0xf]
  %v634 = vld [vmem:[%s9] sm:$0x1]
  %v636 = vlaneseq
  %v637 = vshrl.u32 %v636, 7
  %v638 = vsub.s32 0, %v637
  %v639 = vrot.slane %v634, %v638
  %v673 = vunpack.c.l.b16 %v602
  %v674 = vunpack.c.l.b16 %v603
  %v675 = vunpack.c.l.b16 %v604
  %v676 = vunpack.c.l.b16 %v605
  %v677 = vunpack.c.l.b16 %v606
  %v678 = vunpack.c.l.b16 %v607
  %v679 = vunpack.c.l.b16 %v608
  %v680 = vunpack.c.l.b16 %v609
  %v681 = vunpack.c.l.b16 %v610
  %v682 = vunpack.c.l.b16 %v611
  %v683 = vunpack.c.l.b16 %v612
  %v684 = vunpack.c.l.b16 %v613
  %v685 = vunpack.c.l.b16 %v614
  %v686 = vunpack.c.l.b16 %v615
  %v687 = vunpack.c.l.b16 %v616
  %v688 = vunpack.c.l.b16 %v617
  %v689 = vunpack.c.l.b16 %v618
  %v690 = vunpack.c.l.b16 %v619
  %v691 = vunpack.c.l.b16 %v620
  %v692 = vunpack.c.l.b16 %v621
  %v693 = vunpack.c.l.b16 %v622
  %v694 = vunpack.c.l.b16 %v623
  %v695 = vunpack.c.l.b16 %v624
  %v696 = vunpack.c.l.b16 %v625
  %v697 = vunpack.c.l.b16 %v626
  %v698 = vunpack.c.l.b16 %v627
  %v699 = vunpack.c.l.b16 %v628
  %v700 = vunpack.c.l.b16 %v629
  %v701 = vunpack.c.l.b16 %v630
  %v702 = vunpack.c.l.b16 %v631
  %v703 = vunpack.c.l.b16 %v632
  %v704 = vunpack.c.l.b16 %v633
  %v705 = vpack.c.b16 %v674, %v673
  %v706 = vpack.c.b16 %v676, %v675
  %v707 = vpack.c.b16 %v678, %v677
  %v708 = vpack.c.b16 %v680, %v679
  %v709 = vpack.c.b16 %v682, %v681
  %v710 = vpack.c.b16 %v684, %v683
  %v711 = vpack.c.b16 %v686, %v685
  %v712 = vpack.c.b16 %v688, %v687
  %v713 = vpack.c.b16 %v690, %v689
  %v714 = vpack.c.b16 %v692, %v691
  %v715 = vpack.c.b16 %v694, %v693
  %v716 = vpack.c.b16 %v696, %v695
  %v717 = vpack.c.b16 %v698, %v697
  %v718 = vpack.c.b16 %v700, %v699
  %v719 = vpack.c.b16 %v702, %v701
  %v720 = vpack.c.b16 %v704, %v703
  %737 = vmatprep.subr.bf16.mxu0 0
  %738 = vmatpush1.bf16.msra.mxu0 %v712
  %739 = vmatprep.subr.bf16.mxu0 0
  %740 = vmatpush1.bf16.msra.mxu0 %v711
  %741 = vmatprep.subr.bf16.mxu0 0
  %742 = vmatpush1.bf16.msra.mxu0 %v710
  %743 = vmatprep.subr.bf16.mxu0 0
  %744 = vmatpush1.bf16.msra.mxu0 %v709
  %745 = vmatprep.subr.bf16.mxu0 0
  %746 = vmatpush1.bf16.msra.mxu0 %v708
  %747 = vmatprep.subr.bf16.mxu0 0
  %748 = vmatpush1.bf16.msra.mxu0 %v707
  %749 = vmatprep.subr.bf16.mxu0 0
  %750 = vmatpush1.bf16.msra.mxu0 %v706
  %751 = vmatprep.subr.bf16.mxu0 0
  %752 = vmatpush1.bf16.msra.mxu0 %v705
  %753 = vmatprep.subr.bf16.mxu0 0
  %754 = vmatpush2.bf16.msra.mxu0 %v720
  %755 = vmatprep.subr.bf16.mxu0 0
  %756 = vmatpush2.bf16.msra.mxu0 %v719
  %757 = vmatprep.subr.bf16.mxu0 0
  %758 = vmatpush2.bf16.msra.mxu0 %v718
  %759 = vmatprep.subr.bf16.mxu0 0
  %760 = vmatpush2.bf16.msra.mxu0 %v717
  %761 = vmatprep.subr.bf16.mxu0 0
  %762 = vmatpush2.bf16.msra.mxu0 %v716
  %763 = vmatprep.subr.bf16.mxu0 0
  %764 = vmatpush2.bf16.msra.mxu0 %v715
  %765 = vmatprep.subr.bf16.mxu0 0
  %766 = vmatpush2.bf16.msra.mxu0 %v714
  %767 = vmatprep.subr.bf16.mxu0 0
  %768 = vmatpush2.bf16.msra.mxu0 %v713
  %769 = vmatprep.mubr.bf16.mxu0 %v601
  %770 = vmatmul.mubr.bf16.gmra.mxu0 %v559
  %v771 = vpop.f32.mrf.mxu0
  %v772 = vadd.f32 %v639, %v771
  %v773 = vpop.f32.mrf.mxu0
  %v774 = vpop.f32.mrf.mxu0
  %v775 = vadd.f32 %v639, %v774
  %v776 = vpop.f32.mrf.mxu0
  %777 = vdwg.mxu0
  %v778 = vpack.c.bf16 %v775, %v772
  %779 = vmatprep.subr.bf16.mxu0 0
  %780 = vmatpush1.bf16.msra.mxu0 0
  %781 = vmatprep.subr.bf16.mxu0 0
  %782 = vmatpush1.bf16.msra.mxu0 0
  %783 = vmatprep.subr.bf16.mxu0 0
  %784 = vmatpush1.bf16.msra.mxu0 0
  %785 = vmatprep.subr.bf16.mxu0 0
  %786 = vmatpush1.bf16.msra.mxu0 0
  %787 = vmatprep.subr.bf16.mxu0 0
  %788 = vmatpush1.bf16.msra.mxu0 0
  %789 = vmatprep.subr.bf16.mxu0 0
  %790 = vmatpush1.bf16.msra.mxu0 0
  %791 = vmatprep.subr.bf16.mxu0 0
  %792 = vmatpush1.bf16.msra.mxu0 0
  %793 = vmatprep.subr.bf16.mxu0 0
  %794 = vmatpush1.bf16.msra.mxu0 %v778
  %795 = vmatprep.subr.bf16.mxu0 0
  %796 = vmatpush2.bf16.msra.mxu0 0
  %797 = vmatprep.subr.bf16.mxu0 0
  %798 = vmatpush2.bf16.msra.mxu0 0
  %799 = vmatprep.subr.bf16.mxu0 0
  %800 = vmatpush2.bf16.msra.mxu0 0
  %801 = vmatprep.subr.bf16.mxu0 0
  %802 = vmatpush2.bf16.msra.mxu0 0
  %803 = vmatprep.subr.bf16.mxu0 0
  %804 = vmatpush2.bf16.msra.mxu0 0
  %805 = vmatprep.subr.bf16.mxu0 0
  %806 = vmatpush2.bf16.msra.mxu0 0
  %807 = vmatprep.subr.bf16.mxu0 0
  %808 = vmatpush2.bf16.msra.mxu0 0
  %809 = vmatprep.subr.bf16.mxu0 0
  %810 = vmatpush2.bf16.msra.mxu0 0
  %811 = vmatprep.mubr.bf16.mxu0 0
  %812 = vmatmul.mubr.bf16.gmra.mxu0 %v120
  %v813 = vpop.f32.mrf.mxu0
  %v814 = vadd.f32 0.0, %v813
  %v815 = vpop.f32.mrf.mxu0
  %v816 = vpop.f32.mrf.mxu0
  %v817 = vadd.f32 0.0, %v816
  %v818 = vpop.f32.mrf.mxu0
  %819 = vdwg.mxu0
  %v820 = vpack.c.bf16 %v817, %v814
  %v821 = vld [vmem:[%s10] sm:$0xf]
  %v822 = vld [vmem:[%s10 + $0x4] sm:$0xf]
  %v823 = vld [vmem:[%s10 + $0x8] sm:$0xf]
  %v824 = vld [vmem:[%s10 + $0xc] sm:$0xf]
  %v825 = vld [vmem:[%s10 + $0x10] sm:$0xf]
  %v826 = vld [vmem:[%s10 + $0x14] sm:$0xf]
  %v827 = vld [vmem:[%s10 + $0x18] sm:$0xf]
  %v828 = vld [vmem:[%s10 + $0x1c] sm:$0xf]
  %v829 = vld [vmem:[%s10 + $0x20] sm:$0xf]
  %v830 = vld [vmem:[%s10 + $0x24] sm:$0xf]
  %v831 = vld [vmem:[%s10 + $0x28] sm:$0xf]
  %v832 = vld [vmem:[%s10 + $0x2c] sm:$0xf]
  %v833 = vld [vmem:[%s10 + $0x30] sm:$0xf]
  %v834 = vld [vmem:[%s10 + $0x34] sm:$0xf]
  %v835 = vld [vmem:[%s10 + $0x38] sm:$0xf]
  %v836 = vld [vmem:[%s10 + $0x3c] sm:$0xf]
  %v837 = vld [vmem:[%s10 + $0x40] sm:$0xf]
  %v838 = vld [vmem:[%s10 + $0x44] sm:$0xf]
  %v839 = vld [vmem:[%s10 + $0x48] sm:$0xf]
  %v840 = vld [vmem:[%s10 + $0x4c] sm:$0xf]
  %v841 = vld [vmem:[%s10 + $0x50] sm:$0xf]
  %v842 = vld [vmem:[%s10 + $0x54] sm:$0xf]
  %v843 = vld [vmem:[%s10 + $0x58] sm:$0xf]
  %v844 = vld [vmem:[%s10 + $0x5c] sm:$0xf]
  %v845 = vld [vmem:[%s10 + $0x60] sm:$0xf]
  %v846 = vld [vmem:[%s10 + $0x64] sm:$0xf]
  %v847 = vld [vmem:[%s10 + $0x68] sm:$0xf]
  %v848 = vld [vmem:[%s10 + $0x6c] sm:$0xf]
  %v849 = vld [vmem:[%s10 + $0x70] sm:$0xf]
  %v850 = vld [vmem:[%s10 + $0x74] sm:$0xf]
  %v851 = vld [vmem:[%s10 + $0x78] sm:$0xf]
  %v852 = vld [vmem:[%s10 + $0x7c] sm:$0xf]
  %v853 = vld [vmem:[%s11] sm:$0x1]
  %v855 = vlaneseq
  %v856 = vshrl.u32 %v855, 7
  %v857 = vsub.s32 0, %v856
  %v858 = vrot.slane %v853, %v857
  %v892 = vunpack.c.l.b16 %v821
  %v893 = vunpack.c.l.b16 %v822
  %v894 = vunpack.c.l.b16 %v823
  %v895 = vunpack.c.l.b16 %v824
  %v896 = vunpack.c.l.b16 %v825
  %v897 = vunpack.c.l.b16 %v826
  %v898 = vunpack.c.l.b16 %v827
  %v899 = vunpack.c.l.b16 %v828
  %v900 = vunpack.c.l.b16 %v829
  %v901 = vunpack.c.l.b16 %v830
  %v902 = vunpack.c.l.b16 %v831
  %v903 = vunpack.c.l.b16 %v832
  %v904 = vunpack.c.l.b16 %v833
  %v905 = vunpack.c.l.b16 %v834
  %v906 = vunpack.c.l.b16 %v835
  %v907 = vunpack.c.l.b16 %v836
  %v908 = vunpack.c.l.b16 %v837
  %v909 = vunpack.c.l.b16 %v838
  %v910 = vunpack.c.l.b16 %v839
  %v911 = vunpack.c.l.b16 %v840
  %v912 = vunpack.c.l.b16 %v841
  %v913 = vunpack.c.l.b16 %v842
  %v914 = vunpack.c.l.b16 %v843
  %v915 = vunpack.c.l.b16 %v844
  %v916 = vunpack.c.l.b16 %v845
  %v917 = vunpack.c.l.b16 %v846
  %v918 = vunpack.c.l.b16 %v847
  %v919 = vunpack.c.l.b16 %v848
  %v920 = vunpack.c.l.b16 %v849
  %v921 = vunpack.c.l.b16 %v850
  %v922 = vunpack.c.l.b16 %v851
  %v923 = vunpack.c.l.b16 %v852
  %v924 = vpack.c.b16 %v893, %v892
  %v925 = vpack.c.b16 %v895, %v894
  %v926 = vpack.c.b16 %v897, %v896
  %v927 = vpack.c.b16 %v899, %v898
  %v928 = vpack.c.b16 %v901, %v900
  %v929 = vpack.c.b16 %v903, %v902
  %v930 = vpack.c.b16 %v905, %v904
  %v931 = vpack.c.b16 %v907, %v906
  %v932 = vpack.c.b16 %v909, %v908
  %v933 = vpack.c.b16 %v911, %v910
  %v934 = vpack.c.b16 %v913, %v912
  %v935 = vpack.c.b16 %v915, %v914
  %v936 = vpack.c.b16 %v917, %v916
  %v937 = vpack.c.b16 %v919, %v918
  %v938 = vpack.c.b16 %v921, %v920
  %v939 = vpack.c.b16 %v923, %v922
  %956 = vmatprep.subr.bf16.mxu0 0
  %957 = vmatpush1.bf16.msra.mxu0 %v931
  %958 = vmatprep.subr.bf16.mxu0 0
  %959 = vmatpush1.bf16.msra.mxu0 %v930
  %960 = vmatprep.subr.bf16.mxu0 0
  %961 = vmatpush1.bf16.msra.mxu0 %v929
  %962 = vmatprep.subr.bf16.mxu0 0
  %963 = vmatpush1.bf16.msra.mxu0 %v928
  %964 = vmatprep.subr.bf16.mxu0 0
  %965 = vmatpush1.bf16.msra.mxu0 %v927
  %966 = vmatprep.subr.bf16.mxu0 0
  %967 = vmatpush1.bf16.msra.mxu0 %v926
  %968 = vmatprep.subr.bf16.mxu0 0
  %969 = vmatpush1.bf16.msra.mxu0 %v925
  %970 = vmatprep.subr.bf16.mxu0 0
  %971 = vmatpush1.bf16.msra.mxu0 %v924
  %972 = vmatprep.subr.bf16.mxu0 0
  %973 = vmatpush2.bf16.msra.mxu0 %v939
  %974 = vmatprep.subr.bf16.mxu0 0
  %975 = vmatpush2.bf16.msra.mxu0 %v938
  %976 = vmatprep.subr.bf16.mxu0 0
  %977 = vmatpush2.bf16.msra.mxu0 %v937
  %978 = vmatprep.subr.bf16.mxu0 0
  %979 = vmatpush2.bf16.msra.mxu0 %v936
  %980 = vmatprep.subr.bf16.mxu0 0
  %981 = vmatpush2.bf16.msra.mxu0 %v935
  %982 = vmatprep.subr.bf16.mxu0 0
  %983 = vmatpush2.bf16.msra.mxu0 %v934
  %984 = vmatprep.subr.bf16.mxu0 0
  %985 = vmatpush2.bf16.msra.mxu0 %v933
  %986 = vmatprep.subr.bf16.mxu0 0
  %987 = vmatpush2.bf16.msra.mxu0 %v932
  %988 = vmatprep.mubr.bf16.mxu0 %v820
  %989 = vmatmul.mubr.bf16.gmra.mxu0 %v778
  %v990 = vpop.f32.mrf.mxu0
  %v991 = vadd.f32 %v858, %v990
  %v992 = vpop.f32.mrf.mxu0
  %v993 = vpop.f32.mrf.mxu0
  %v994 = vadd.f32 %v858, %v993
  %v995 = vpop.f32.mrf.mxu0
  %996 = vdwg.mxu0
  %v997 = vld [vmem:[%s3] sm:$0xf]
  %v998 = vld [vmem:[%s3 + $0x4] sm:$0xf]
  %v999 = vld [vmem:[%s3 + $0x8] sm:$0xf]
  %v1000 = vld [vmem:[%s3 + $0xc] sm:$0xf]
  %v1001 = vpack.c.bf16 %v994, %v991
  %v1006 = vunpack.c.l.b16 %v997
  %v1007 = vunpack.c.l.b16 %v998
  %v1008 = vunpack.c.l.b16 %v999
  %v1009 = vunpack.c.l.b16 %v1000
  %v1010 = vpack.c.b16 %v1007, %v1006
  %v1011 = vpack.c.b16 %v1009, %v1008
  %v1013 = vsel %vm118, %v1010, 0
  %v1016 = vsel %vm118, %v1011, 0
  %1018 = vmatprep.subr.bf16.mxu0 0
  %1019 = vmatpush1.bf16.msra.mxu0 0
  %1020 = vmatprep.subr.bf16.mxu0 0
  %1021 = vmatpush1.bf16.msra.mxu0 0
  %1022 = vmatprep.subr.bf16.mxu0 0
  %1023 = vmatpush1.bf16.msra.mxu0 0
  %1024 = vmatprep.subr.bf16.mxu0 0
  %1025 = vmatpush1.bf16.msra.mxu0 0
  %1026 = vmatprep.subr.bf16.mxu0 0
  %1027 = vmatpush1.bf16.msra.mxu0 0
  %1028 = vmatprep.subr.bf16.mxu0 0
  %1029 = vmatpush1.bf16.msra.mxu0 0
  %1030 = vmatprep.subr.bf16.mxu0 0
  %1031 = vmatpush1.bf16.msra.mxu0 0
  %1032 = vmatprep.subr.bf16.mxu0 0
  %1033 = vmatpush1.bf16.msra.mxu0 %v1001
  %1034 = vmatprep.subr.bf16.mxu0 0
  %1035 = vmatpush2.bf16.msra.mxu0 0
  %1036 = vmatprep.subr.bf16.mxu0 0
  %1037 = vmatpush2.bf16.msra.mxu0 0
  %1038 = vmatprep.subr.bf16.mxu0 0
  %1039 = vmatpush2.bf16.msra.mxu0 0
  %1040 = vmatprep.subr.bf16.mxu0 0
  %1041 = vmatpush2.bf16.msra.mxu0 0
  %1042 = vmatprep.subr.bf16.mxu0 0
  %1043 = vmatpush2.bf16.msra.mxu0 0
  %1044 = vmatprep.subr.bf16.mxu0 0
  %1045 = vmatpush2.bf16.msra.mxu0 0
  %1046 = vmatprep.subr.bf16.mxu0 0
  %1047 = vmatpush2.bf16.msra.mxu0 0
  %1048 = vmatprep.subr.bf16.mxu0 0
  %1049 = vmatpush2.bf16.msra.mxu0 0
  %1050 = vmatprep.mubr.bf16.mxu0 0
  %1051 = vmatmul.mubr.bf16.gmra.mxu0 %v1013
  %v1052 = vpop.f32.mrf.mxu0
  %v1053 = vadd.f32 0.0, %v1052
  %v1054 = vpop.f32.mrf.mxu0
  %v1055 = vpop.f32.mrf.mxu0
  %v1056 = vadd.f32 0.0, %v1055
  %v1057 = vpop.f32.mrf.mxu0
  %1058 = vmatprep.mubr.bf16.mxu0 0
  %1059 = vmatmul.mubr.bf16.gmra.mxu0 %v1016
  %v1060 = vpop.f32.mrf.mxu0
  %v1061 = vadd.f32 0.0, %v1060
  %v1062 = vpop.f32.mrf.mxu0
  %v1063 = vpop.f32.mrf.mxu0
  %v1064 = vadd.f32 0.0, %v1063
  %v1065 = vpop.f32.mrf.mxu0
  %1066 = vdwg.mxu0
  %1067 = vst [vmem:[%s12] sm:$0xff] %v1053
  %1068 = vst [vmem:[%s12 + $0x8] sm:$0xff] %v1056
  %1069 = vst [vmem:[%s12 + $0x10] sm:$0xff] %v1061
  %1070 = vst [vmem:[%s12 + $0x18] sm:$0xff] %v1064
  // Predicated region
  $region50: #{conv_block4_forward.1} parent=0 // pred_check
    _
  $region51: #{conv_block4_forward.1} parent=0 // pred_check_branch
    %1072 = sbr.rel (0) target = $region53
  $region52: #{conv_block4_forward.1} parent=0 // pred_region
    _
  $region53: #{conv_block4_forward.1} parent=0 // pred_fallthru
    _
  // Predicated region
  $region54: #{conv_block4_forward.1} parent=0 // pred_check
    _
  $region55: #{conv_block4_forward.1} parent=0 // pred_check_branch
    %1074 = sbr.rel (0) target = $region57
  $region56: #{conv_block4_forward.1} parent=0 // pred_region
    _
  $region57: #{conv_block4_forward.1} parent=0 // pred_fallthru
    _

</llo_original>
